<compile_context>
chip_gen: v7x
topology: tpu7x:2x2x1
jax: 0.10.0
libtpu: 0.0.40
codegen_flags: <defaults>
</compile_context>

<pallas_src>
import functools

import jax
import jax.numpy as jnp
from jax import lax
from jax.experimental import pallas as pl
from jax.experimental.pallas import tpu as pltpu

ALPHA = 9.0
EPS = 1e-6
_LANES = 128
_SUBLANES = 8
_MAX_TILE_ROWS = 4096   # (4096,128) f32 = 2 MiB; 2 inputs x 2 bufs = 8 MiB VMEM


def _wbce_kernel(pred_ref, tgt_ref, out_ref, *, alpha, n_valid, tile_r,
                 needs_mask):
    step = pl.program_id(1)

    # The output block index is constant along the "arbitrary" step axis, so
    # it stays resident in VMEM: init on the first step, accumulate after.
    @pl.when(step == 0)
    def _():
        out_ref[...] = jnp.zeros_like(out_ref)

    p = pred_ref[...].astype(jnp.float32)
    t = tgt_ref[...].astype(jnp.float32)

    p = jnp.clip(p, EPS, 1.0 - EPS)
    t = jnp.clip(t, EPS, 1.0 - EPS)

    one_m_t = 1.0 - t
    w = 1.0 + alpha * t            # weights = 1 + alpha * target

    # Same term grouping as the PyTorch module (the weight multiplies only
    # the last term, matching operator precedence).  The 4 logs go to the EUP
    # slot and overlap with the VPU adds/muls and the streaming DMAs.
    loss = (-t * jnp.log(p)
            - one_m_t * jnp.log(1.0 - p)
            + t * jnp.log(t)
            + one_m_t * jnp.log(1.0 - t) * w)

    if needs_mask:
        # Zero contributions from wrapper padding (flat index >= n_valid).
        base = ((pl.program_id(0) * pl.num_programs(1) + step)
                * (tile_r * _LANES))
        row_ids = lax.broadcasted_iota(jnp.int32, (tile_r, _LANES), 0)
        lane_ids = lax.broadcasted_iota(jnp.int32, (tile_r, _LANES), 1)
        flat_idx = base + row_ids * _LANES + lane_ids
        loss = jnp.where(flat_idx < n_valid, loss, 0.0)

    # Vreg-shaped partial sum: (tile_r,128) -> (tile_r/8, 8, 128) keeps each
    # (8,128) chunk a whole vreg, so the axis-0 sum is a pure VPU add tree.
    out_ref[...] += jnp.sum(loss.reshape(-1, _SUBLANES, _LANES), axis=0)


def _round_up(x, m):
    return -(-x // m) * m


def _choose_tiling(rows):
    """Return (n_parallel, steps_per_core, tile_r) covering >= `rows` rows."""
    if rows <= _MAX_TILE_ROWS:
        # Single block, single core: tiny inputs don't benefit from a split.
        return 1, 1, max(_SUBLANES, _round_up(rows, _SUBLANES))
    # Enough work: 2-way core split (megacore on v7x; a cheap serial outer
    # loop on single-TC chips).  Balanced tiles hug `rows` so coverage is
    # exact (zero-copy path) for the common multiple-of-16-row sizes.
    n_parallel = 2
    per_core = _round_up(pl.cdiv(rows, n_parallel), _SUBLANES)
    steps_per_core = pl.cdiv(per_core, _MAX_TILE_ROWS)
    tile_r = _round_up(pl.cdiv(per_core, steps_per_core), _SUBLANES)
    return n_parallel, steps_per_core, tile_r


def weighted_bce_loss(prediction, target, alpha=ALPHA):
    assert prediction.shape == target.shape
    n_valid = prediction.size

    rows = pl.cdiv(n_valid, _LANES)
    n_parallel, steps_per_core, tile_r = _choose_tiling(rows)
    rows_grid = n_parallel * steps_per_core * tile_r
    n_grid = rows_grid * _LANES
    needs_mask = n_grid != n_valid

    pred_flat = prediction.reshape(-1)
    tgt_flat = target.reshape(-1)
    if needs_mask:
        # Padding costs one extra copy of each input; the tiling above keeps
        # the exact-coverage (no-copy) path for common sizes.
        pad = n_grid - n_valid
        pred_flat = jnp.concatenate(
            [pred_flat, jnp.full((pad,), 0.5, pred_flat.dtype)])
        tgt_flat = jnp.concatenate(
            [tgt_flat, jnp.full((pad,), 0.5, tgt_flat.dtype)])

    pred2d = pred_flat.reshape(rows_grid, _LANES)
    tgt2d = tgt_flat.reshape(rows_grid, _LANES)

    kernel = functools.partial(
        _wbce_kernel, alpha=float(alpha), n_valid=n_valid,
        tile_r=tile_r, needs_mask=needs_mask)

    in_map = lambda c, i: (c * steps_per_core + i, 0)

    partials = pl.pallas_call(
        kernel,
        out_shape=jax.ShapeDtypeStruct((n_parallel * _SUBLANES, _LANES),
                                       jnp.float32),
        grid_spec=pltpu.PrefetchScalarGridSpec(
            num_scalar_prefetch=0,
            grid=(n_parallel, steps_per_core),
            in_specs=[
                pl.BlockSpec((tile_r, _LANES), in_map),
                pl.BlockSpec((tile_r, _LANES), in_map),
            ],
            out_specs=pl.BlockSpec((_SUBLANES, _LANES), lambda c, i: (c, 0)),
        ),
        compiler_params=pltpu.CompilerParams(
            dimension_semantics=("parallel", "arbitrary")),
    )(pred2d, tgt2d)

    # Tiny final reduce (<= 2*8*128 elements) + mean divide in plain XLA.
    return jnp.sum(partials) / n_valid


def _reference(prediction, target, alpha=ALPHA):
    p = jnp.clip(prediction, EPS, 1.0 - EPS)
    t = jnp.clip(target, EPS, 1.0 - EPS)
    w = 1.0 + alpha * t
    loss = (-t * jnp.log(p) - (1.0 - t) * jnp.log(1.0 - p)
            + t * jnp.log(t) + (1.0 - t) * jnp.log(1.0 - t) * w)
    return jnp.mean(loss)


if __name__ == "__main__":
    key = jax.random.PRNGKey(0)
    k1, k2 = jax.random.split(key)
    # NCHW, e.g. segmentation outputs already passed through sigmoid
    shape = (2, 4, 16, 16)
    prediction = jax.random.uniform(k1, shape, dtype=jnp.float32)
    target = (jax.random.uniform(k2, shape, dtype=jnp.float32) > 0.5).astype(
        jnp.float32)

    loss = weighted_bce_loss(prediction, target)
    jax.block_until_ready(loss)

    ref = _reference(prediction, target)
    assert jnp.allclose(loss, ref, rtol=1e-5, atol=1e-5), (loss, ref)
    print("KERNEL_OK")
</pallas_src>

<mosaic_0001>
module attributes {stable_mosaic.version = 11 : i64} {
  func.func @_wbce_kernel(%arg0: i32, %arg1: i32, %arg2: memref<16x128xf32, #tpu.memory_space<vmem>>, %arg3: memref<16x128xf32, #tpu.memory_space<vmem>>, %arg4: memref<8x128xf32, #tpu.memory_space<vmem>>) attributes {dimension_semantics = [#tpu.dimension_semantics<parallel>, #tpu.dimension_semantics<arbitrary>], iteration_bounds = array<i64: 1, 1>, scalar_prefetch = 0 : i64, scratch_operands = 0 : i64, tpu.core_type = #tpu.core_type<tc>, window_params = [{transform_indices = @transform_0, window_bounds = array<i64: 16, 128>}, {transform_indices = @transform_1, window_bounds = array<i64: 16, 128>}, {transform_indices = @transform_2, window_bounds = array<i64: 8, 128>}]} {
    %c0_i32 = arith.constant 0 : i32
    %0 = arith.cmpi eq, %arg1, %c0_i32 : i32
    %1 = arith.extui %0 : i1 to i32
    %c0_i32_0 = arith.constant 0 : i32
    %2 = arith.cmpi ne, %1, %c0_i32_0 : i32
    scf.if %2 {
      %cst_18 = arith.constant 0.000000e+00 : f32
      %42 = vector.broadcast %cst_18 : f32 to vector<8x128xf32>
      %c0_19 = arith.constant 0 : index
      %c0_20 = arith.constant 0 : index
      %43 = vector.load %arg4[%c0_19, %c0_20] : memref<8x128xf32, #tpu.memory_space<vmem>>, vector<8x128xf32>
      tpu.vector_store %arg4[%c0_19, %c0_20], %42 {strides = array<i32>} : memref<8x128xf32, #tpu.memory_space<vmem>>, vector<8x128xf32>,
    } else {
    }
    %c0 = arith.constant 0 : index
    %c0_1 = arith.constant 0 : index
    %3 = vector.load %arg2[%c0, %c0_1] : memref<16x128xf32, #tpu.memory_space<vmem>>, vector<16x128xf32>
    %c0_2 = arith.constant 0 : index
    %c0_3 = arith.constant 0 : index
    %4 = vector.load %arg3[%c0_2, %c0_3] : memref<16x128xf32, #tpu.memory_space<vmem>>, vector<16x128xf32>
    %cst = arith.constant 9.99999997E-7 : f32
    %cst_4 = arith.constant 0.999998986 : f32
    %5 = vector.broadcast %cst : f32 to vector<16x128xf32>
    %6 = arith.maximumf %5, %3 : vector<16x128xf32>
    %7 = vector.broadcast %cst_4 : f32 to vector<16x128xf32>
    %8 = arith.minimumf %7, %6 : vector<16x128xf32>
    %cst_5 = arith.constant 9.99999997E-7 : f32
    %cst_6 = arith.constant 0.999998986 : f32
    %9 = vector.broadcast %cst_5 : f32 to vector<16x128xf32>
    %10 = arith.maximumf %9, %4 : vector<16x128xf32>
    %11 = vector.broadcast %cst_6 : f32 to vector<16x128xf32>
    %12 = arith.minimumf %11, %10 : vector<16x128xf32>
    %cst_7 = arith.constant 1.000000e+00 : f32
    %13 = vector.broadcast %cst_7 : f32 to vector<16x128xf32>
    %14 = arith.subf %13, %12 : vector<16x128xf32>
    %cst_8 = arith.constant 9.000000e+00 : f32
    %15 = vector.broadcast %cst_8 : f32 to vector<16x128xf32>
    %16 = arith.mulf %15, %12 : vector<16x128xf32>
    %cst_9 = arith.constant 1.000000e+00 : f32
    %17 = vector.broadcast %cst_9 : f32 to vector<16x128xf32>
    %18 = arith.addf %17, %16 : vector<16x128xf32>
    %cst_10 = arith.constant 0.000000e+00 : f32
    %19 = vector.broadcast %cst_10 : f32 to vector<16x128xf32>
    %20 = arith.subf %19, %12 : vector<16x128xf32>
    %21 = math.log %8 : vector<16x128xf32>
    %22 = arith.mulf %20, %21 : vector<16x128xf32>
    %cst_11 = arith.constant 1.000000e+00 : f32
    %23 = vector.broadcast %cst_11 : f32 to vector<16x128xf32>
    %24 = arith.subf %23, %8 : vector<16x128xf32>
    %25 = math.log %24 : vector<16x128xf32>
    %26 = arith.mulf %14, %25 : vector<16x128xf32>
    %27 = arith.subf %22, %26 : vector<16x128xf32>
    %28 = math.log %12 : vector<16x128xf32>
    %29 = arith.mulf %12, %28 : vector<16x128xf32>
    %30 = arith.addf %27, %29 : vector<16x128xf32>
    %cst_12 = arith.constant 1.000000e+00 : f32
    %31 = vector.broadcast %cst_12 : f32 to vector<16x128xf32>
    %32 = arith.subf %31, %12 : vector<16x128xf32>
    %33 = math.log %32 : vector<16x128xf32>
    %34 = arith.mulf %14, %33 : vector<16x128xf32>
    %35 = arith.mulf %34, %18 : vector<16x128xf32>
    %36 = arith.addf %30, %35 : vector<16x128xf32>
    %c0_13 = arith.constant 0 : index
    %c0_14 = arith.constant 0 : index
    %37 = vector.load %arg4[%c0_13, %c0_14] : memref<8x128xf32, #tpu.memory_space<vmem>>, vector<8x128xf32>
    %38 = vector.shape_cast %36 : vector<16x128xf32> to vector<2x8x128xf32>
    %cst_15 = arith.constant dense<0.000000e+00> : vector<8x128xf32>
    %39 = vector.multi_reduction <add>, %38, %cst_15 [0] : vector<2x8x128xf32> to vector<8x128xf32>
    %40 = arith.addf %37, %39 : vector<8x128xf32>
    %c0_16 = arith.constant 0 : index
    %c0_17 = arith.constant 0 : index
    %41 = vector.load %arg4[%c0_16, %c0_17] : memref<8x128xf32, #tpu.memory_space<vmem>>, vector<8x128xf32>
    tpu.vector_store %arg4[%c0_16, %c0_17], %40 {strides = array<i32>} : memref<8x128xf32, #tpu.memory_space<vmem>>, vector<8x128xf32>,
    return
  }
  func.func @transform_0(%arg0: i32, %arg1: i32) -> (i32, i32) {
    %c1_i32 = arith.constant 1 : i32
    %0 = arith.muli %arg0, %c1_i32 : i32
    %1 = arith.addi %0, %arg1 : i32
    %c0_i32 = arith.constant 0 : i32
    %c0_i32_0 = arith.constant 0 : i32
    return %1, %c0_i32 : i32, i32
  }
  func.func @transform_1(%arg0: i32, %arg1: i32) -> (i32, i32) {
    %c1_i32 = arith.constant 1 : i32
    %0 = arith.muli %arg0, %c1_i32 : i32
    %1 = arith.addi %0, %arg1 : i32
    %c0_i32 = arith.constant 0 : i32
    %c0_i32_0 = arith.constant 0 : i32
    return %1, %c0_i32 : i32, i32
  }
  func.func @transform_2(%arg0: i32, %arg1: i32) -> (i32, i32) {
    %c0_i32 = arith.constant 0 : i32
    %c0_i32_0 = arith.constant 0 : i32
    return %arg0, %c0_i32 : i32, i32
  }
}

</mosaic_0001>

<llo_original>
// kernel: tpu_custom_call.1
$region0: #{tpu_custom_call.1}
  #allocation0 [shape = 'u32[]', space=smem, size = 0x4, offset = 0x4, fixed_abs, tag = 'smem constant byte address 0x4 - core index']
  #allocation1 [shape = 'u32[144,128]{1,0:T(1,128)}', space=vmem, size = 0x12000, scoped, tag = 'internal scratch']
  %s0 = inlined_call_operand.hbm [shape: f32[16,128], index: 0, kind: input, shape index: {}]
  %s1 = inlined_call_operand.hbm [shape: f32[16,128], index: 1, kind: input, shape index: {}]
  %s2 = inlined_call_operand.hbm [shape: f32[8,128], index: 2, kind: output, shape index: {}]
  %s3 = sld [smem:[#allocation0]]
  $region30: #{tpu_custom_call.1} parent=0
    _
  %s5 = ssub.s32 1, %s3
  %s6 = scalar_select 0, %s5, %s3
  $region1: #{tpu_custom_call.1} parent=0
    #allocation2 [shape = 'u8[8192]{0}', space=vmem, size = 0x2000, scoped, tag = 'input window, operand 0, single buffered']
    #allocation3 [shape = 's32[1]{0}', space=sflag, size = 0x4, scoped, tag = 'scoped memory for tpu_custom_call.1']
    #allocation4 [shape = 's32[1]{0}', space=sflag, size = 0x4, scoped, tag = 'scoped memory for tpu_custom_call.1']
    #allocation5 [shape = 'u8[8192]{0}', space=vmem, size = 0x2000, scoped, tag = 'input window, operand 1, single buffered']
    #allocation6 [shape = 's32[1]{0}', space=sflag, size = 0x4, scoped, tag = 'scoped memory for tpu_custom_call.1']
    #allocation7 [shape = 'u8[4096]{0}', space=vmem, size = 0x1000, scoped, tag = 'output window, operand 0, single buffered']
    %7 = vsyncpa [#allocation3], 0
    %8 = vsyncpa [#allocation6], 0
    %9 = vsyncpa [#allocation4], 0
    // Predicated region
    $region2: #{tpu_custom_call.1} parent=1 // pred_check
      _
    $region3: #{tpu_custom_call.1} parent=1 // pred_check_branch
      %11 = sbr.rel (0) target = $region5
    $region4: #{tpu_custom_call.1} parent=1 // pred_region
      %s12 = sadd.s32 0, 0
      %s13 = smul.u32 2, %s12
      %s15 = ssub.s32 256, 256
      %16 = vsyncadd [#allocation3], %s15
      %s17 = smul.addr %s13, 128
      %s18 = scalar_lea.hbm %s0, %s17
      %s19 = sshll.u32 [#allocation2], 4
      %s20 = int_to_ptr.vmem [resolvable:$true] %s19
      %25 = dma.hbm_to_vmem [thread:$0]  %s18, 256, %s20, [#allocation3], 128, 128, 8
    $region5: #{tpu_custom_call.1} parent=1 // pred_fallthru
      _
    // Predicated region
    $region6: #{tpu_custom_call.1} parent=1 // pred_check
      _
    $region7: #{tpu_custom_call.1} parent=1 // pred_check_branch
      %27 = sbr.rel (0) target = $region9
    $region8: #{tpu_custom_call.1} parent=1 // pred_region
      %s28 = sadd.s32 0, 0
      %s29 = smul.u32 2, %s28
      %s31 = ssub.s32 256, 256
      %32 = vsyncadd [#allocation6], %s31
      %s33 = smul.addr %s29, 128
      %s34 = scalar_lea.hbm %s1, %s33
      %s35 = sshll.u32 [#allocation5], 4
      %s36 = int_to_ptr.vmem [resolvable:$true] %s35
      %41 = dma.hbm_to_vmem [thread:$0]  %s34, 256, %s36, [#allocation6], 128, 128, 8
    $region9: #{tpu_custom_call.1} parent=1 // pred_fallthru
      _
    // Predicated region
    $region10: #{tpu_custom_call.1} parent=1 // pred_check
      _
    $region11: #{tpu_custom_call.1} parent=1 // pred_check_branch
      %43 = sbr.rel (0) target = $region13
    $region12: #{tpu_custom_call.1} parent=1 // pred_region
      %44 = dma.done [#allocation3], 256
    $region13: #{tpu_custom_call.1} parent=1 // pred_fallthru
      _
    // Predicated region
    $region14: #{tpu_custom_call.1} parent=1 // pred_check
      _
    $region15: #{tpu_custom_call.1} parent=1 // pred_check_branch
      %46 = sbr.rel (0) target = $region17
    $region16: #{tpu_custom_call.1} parent=1 // pred_region
      %47 = dma.done [#allocation6], 256
    $region17: #{tpu_custom_call.1} parent=1 // pred_fallthru
      _
    %s48 = sadd.s32 0, 0
    %s49 = smul.u32 2, %s48
    %s50 = sadd.s32 0, 0
    %s51 = smul.u32 2, %s50
    %p52 = scmp.eq.s32.totalorder 0, 0
    // Predicated region
    $region18: #{tpu_custom_call.1} parent=1 // pred_check
      %p53 = pneg %p52
    $region19: #{tpu_custom_call.1} parent=1 // pred_check_branch
      %55 = sbr.rel (%p53) target = $region21
    $region20: #{tpu_custom_call.1} parent=1 // pred_region
      %56 = vst [vmem:[#allocation7] sm:$0xff] 0.0
    $region21: #{tpu_custom_call.1} parent=1 // pred_fallthru
      _
    %v57 = vld [vmem:[#allocation2] sm:$0xff]
    %v58 = vld [vmem:[#allocation2 + $0x8] sm:$0xff]
    %v59 = vld [vmem:[#allocation5] sm:$0xff]
    %v60 = vld [vmem:[#allocation5 + $0x8] sm:$0xff]
    %v61 = vmax.f32 %v57, 1e-06
    %v62 = vmax.f32 %v58, 1e-06
    %v63 = vmin.f32 %v61, 0.999999
    %v64 = vmin.f32 %v62, 0.999999
    %v65 = vmax.f32 %v59, 1e-06
    %v66 = vmax.f32 %v60, 1e-06
    %v67 = vmin.f32 %v65, 0.999999
    %v68 = vmin.f32 %v66, 0.999999
    %v69 = vsub.f32 1.0, %v67
    %v70 = vsub.f32 1.0, %v68
    %v71 = vmul.f32 %v67, 9.0
    %v72 = vmul.f32 %v68, 9.0
    %v73 = vadd.f32 %v71, 1.0
    %v74 = vadd.f32 %v72, 1.0
    %v75 = vsub.f32 0.0, %v67
    %v76 = vsub.f32 0.0, %v68
    %v77 = vlog2.pop %v63
    %v78 = vmul.f32 %v77, 0.6931472
    %v79 = vlog2.pop %v64
    %v80 = vmul.f32 %v79, 0.6931472
    %v81 = vmul.f32 %v75, %v78
    %v82 = vmul.f32 %v76, %v80
    %v83 = vsub.f32 1.0, %v63
    %v84 = vsub.f32 1.0, %v64
    %v85 = vlog2.pop %v83
    %v86 = vmul.f32 %v85, 0.6931472
    %v87 = vlog2.pop %v84
    %v88 = vmul.f32 %v87, 0.6931472
    %v89 = vmul.f32 %v69, %v86
    %v90 = vmul.f32 %v70, %v88
    %v91 = vsub.f32 %v81, %v89
    %v92 = vsub.f32 %v82, %v90
    %v93 = vlog2.pop %v67
    %v94 = vmul.f32 %v93, 0.6931472
    %v95 = vlog2.pop %v68
    %v96 = vmul.f32 %v95, 0.6931472
    %v97 = vmul.f32 %v67, %v94
    %v98 = vmul.f32 %v68, %v96
    %v99 = vadd.f32 %v91, %v97
    %v100 = vadd.f32 %v92, %v98
    %v101 = vlog2.pop %v69
    %v102 = vmul.f32 %v101, 0.6931472
    %v103 = vlog2.pop %v70
    %v104 = vmul.f32 %v103, 0.6931472
    %v105 = vmul.f32 %v69, %v102
    %v106 = vmul.f32 %v70, %v104
    %v107 = vmul.f32 %v105, %v73
    %v108 = vmul.f32 %v106, %v74
    %v109 = vadd.f32 %v99, %v107
    %v110 = vadd.f32 %v100, %v108
    %v111 = vld [vmem:[#allocation7] sm:$0xff]
    %v112 = vadd.f32 %v109, %v110
    %v113 = vadd.f32 %v111, %v112
    %114 = vst [vmem:[#allocation7] sm:$0xff] %v113
    // Predicated region
    $region22: #{tpu_custom_call.1} parent=1 // pred_check
      _
    $region23: #{tpu_custom_call.1} parent=1 // pred_check_branch
      %116 = sbr.rel (0) target = $region25
    $region24: #{tpu_custom_call.1} parent=1 // pred_region
      %s118 = ssub.s32 128, 128
      %119 = vsyncadd [#allocation4], %s118
      %s121 = sshll.u32 [#allocation7], 4
      %s122 = int_to_ptr.vmem [resolvable:$true] %s121
      %124 = dma.vmem_to_hbm [thread:$0]  %s122, 128, %s2, [#allocation4]
    $region25: #{tpu_custom_call.1} parent=1 // pred_fallthru
      _
    // Predicated region
    $region26: #{tpu_custom_call.1} parent=1 // pred_check
      _
    $region27: #{tpu_custom_call.1} parent=1 // pred_check_branch
      %126 = sbr.rel (0) target = $region29
    $region28: #{tpu_custom_call.1} parent=1 // pred_region
      %127 = dma.done [#allocation4], 128
    $region29: #{tpu_custom_call.1} parent=1 // pred_fallthru
      _
    %128 = vsyncpa [#allocation3], 1
    %129 = vsyncpa [#allocation6], 1
    %130 = vsyncpa [#allocation4], 1

</llo_original>
